<compile_context>
chip_gen: v7x
topology: tpu7x:2x2x1
jax: 0.10.0
libtpu: 0.0.40
codegen_flags: <defaults>
</compile_context>

<pallas_src>
import math

import jax
import jax.numpy as jnp
from jax import lax
from jax.experimental import pallas as pl
from jax.experimental.pallas import tpu as pltpu


def _round_up(x, m):
    return ((x + m - 1) // m) * m


def _vmem_capacity_bytes():
    try:
        return int(pltpu.get_tpu_info().vmem_capacity_bytes)
    except Exception:
        return 64 << 20  # conservative (v7x-sized) fallback


def _choose_tiles(N, V, itemsize, tn_max, tv_max, tile_budget_bytes):
    """Pick (tn, tv). Blocks equal to a full array dim are always legal; other
    blocks keep tn a sublane multiple and tv a lane (128) multiple."""
    sub = {4: 8, 2: 16, 1: 32}.get(itemsize, 8)
    tn_max = max(sub, (tn_max // sub) * sub)
    tn = N if N <= tn_max else tn_max            # last row block may be ragged

    lane_budget = (tile_budget_bytes // max(1, _round_up(tn, sub) * itemsize))
    lane_budget = max(128, (lane_budget // 128) * 128)
    lane_budget = min(lane_budget, max(128, (tv_max // 128) * 128))
    if _round_up(V, 128) <= lane_budget:
        tv = V                                   # single full-vocab tile
    else:
        tv = lane_budget                         # last vocab block may be ragged
    return tn, tv


def _make_ls_kernel(N, V, need_row_mask, need_col_mask):
    def kernel(logits_ref, target_ref, mask_ref, nll_ref, smooth_ref, ntok_ref):
        i = pl.program_id(0)   # row (token) tile  -- "parallel"
        k = pl.program_id(1)   # vocab tile        -- reduction axis, innermost

        @pl.when(k == 0)
        def _init():
            nll_ref[...] = jnp.zeros_like(nll_ref)
            smooth_ref[...] = jnp.zeros_like(smooth_ref)
            ntok_ref[...] = jnp.zeros_like(ntok_ref)

        logits = logits_ref[...]                      # (tn, tv), native dtype
        tgt = target_ref[...]                         # (tn, 1) int32
        msk = mask_ref[...]                           # (tn, 1) f32

        tn, tv = logits.shape
        lane = lax.broadcasted_iota(jnp.int32, (tn, tv), 1)
        zero = jnp.zeros((), logits.dtype)

        # Mask out-of-range rows / lanes of ragged edge tiles (their VMEM
        # contents are unspecified).  Offsets go on scalars / (tn,1) tensors,
        # never as a (tn,tv) tile-wide add.
        valid = None
        if need_row_mask:
            row_ok = (i * tn + lax.broadcasted_iota(jnp.int32, (tn, 1), 0)) < N
            msk = jnp.where(row_ok, msk, 0.0)
            valid = row_ok
        if need_col_mask:
            col_ok = lane < (V - k * tv)
            valid = col_ok if valid is None else jnp.logical_and(valid, col_ok)
        if valid is not None:
            logits = jnp.where(valid, logits, zero)

        # "Gather" logits[row, target[row]] via lane-iota == (target - k*tv).
        hit = lane == (tgt - k * tv)
        picked = jnp.sum(jnp.where(hit, logits, zero), axis=1, keepdims=True,
                         dtype=jnp.float32)                      # (tn, 1)
        row_sum = jnp.sum(logits, axis=1, keepdims=True,
                          dtype=jnp.float32)                     # (tn, 1)
        # TODO(synk): if a bundle dump shows the VALU slot saturated (v7x),
        # offload row_sum to the idle MXU via a ones-vector matmul.

        nll_ref[...] += jnp.sum(-picked * msk, keepdims=True)
        smooth_ref[...] += jnp.sum(-row_sum * msk, keepdims=True)

        @pl.when(k == 0)
        def _count():
            ntok_ref[...] += jnp.sum(msk, keepdims=True)

    return kernel


def label_smoothing_loss(logits, target, target_mask=None, *,
                         label_smoothing, tn_max=256, tv_max=8192):
    """Fused label-smoothing loss (reduce=True). Returns (loss/n_tok, nll/n_tok).

    logits: (..., V) float; target: (...,) int; target_mask: (...,) 0/1 or None.
    """
    V = logits.shape[-1]
    N = math.prod(logits.shape[:-1])
    itemsize = jnp.dtype(logits.dtype).itemsize

    vmem_cap = _vmem_capacity_bytes()
    # One logits tile (the pipeline double-buffers it); leave room for the
    # small row tiles, the outputs and compiler-internal scratch.
    tile_budget = int(min(16 << 20, max(2 << 20, vmem_cap // 8)))

    tn, tv = _choose_tiles(N, V, itemsize, tn_max, tv_max, tile_budget)
    grid = (pl.cdiv(N, tn), pl.cdiv(V, tv))
    num_row_tiles = grid[0]
    need_row_mask = (N % tn) != 0
    need_col_mask = (V % tv) != 0

    logits2d = logits.reshape(N, V)
    target2d = target.reshape(N, 1).astype(jnp.int32)
    if target_mask is None:
        mask2d = jnp.ones((N, 1), jnp.float32)
    else:
        mask2d = (target_mask.reshape(N, 1) == 1).astype(jnp.float32)

    sub = {4: 8, 2: 16, 1: 32}.get(itemsize, 8)
    tile_bytes = _round_up(tn, sub) * _round_up(tv, 128) * itemsize
    vmem_limit = int(min(vmem_cap - (8 << 20),
                         max(8 << 20, 2 * tile_bytes + (4 << 20))))

    out_shape = tuple(jax.ShapeDtypeStruct((num_row_tiles, 1, 128), jnp.float32)
                      for _ in range(3))
    out_spec = pl.BlockSpec((1, 1, 128), lambda i, k: (i, 0, 0))

    nll_p, smooth_p, ntok_p = pl.pallas_call(
        _make_ls_kernel(N, V, need_row_mask, need_col_mask),
        out_shape=out_shape,
        grid_spec=pltpu.PrefetchScalarGridSpec(
            num_scalar_prefetch=0,
            grid=grid,
            in_specs=[
                pl.BlockSpec((tn, tv), lambda i, k: (i, k)),   # logits tile
                pl.BlockSpec((tn, 1), lambda i, k: (i, 0)),    # targets (resident over k)
                pl.BlockSpec((tn, 1), lambda i, k: (i, 0)),    # mask (resident over k)
            ],
            out_specs=[out_spec, out_spec, out_spec],
        ),
        compiler_params=pltpu.CompilerParams(
            dimension_semantics=("parallel", "arbitrary"),
            vmem_limit_bytes=vmem_limit,
        ),
    )(logits2d, target2d, mask2d)

    nll_sum = jnp.sum(nll_p[:, 0, 0])
    smooth_sum = jnp.sum(smooth_p[:, 0, 0])
    if target_mask is None:
        n_tokens = jnp.float32(N)               # target.numel()
    else:
        n_tokens = jnp.sum(ntok_p[:, 0, 0])     # mask.eq(1) count (0/1 mask assumed)

    eps_i = label_smoothing / V
    loss = (1.0 - label_smoothing) * nll_sum + eps_i * smooth_sum
    return loss / n_tokens, nll_sum / n_tokens


def _reference(logits, target, target_mask, ls):
    V = logits.shape[-1]
    nll = -jnp.take_along_axis(logits, target[..., None], axis=-1)[..., 0]
    smooth = -jnp.sum(logits, axis=-1)
    if target_mask is not None:
        m = target_mask == 1
        nll = jnp.where(m, nll, 0.0)
        smooth = jnp.where(m, smooth, 0.0)
        n_tok = jnp.sum(target_mask).astype(jnp.float32)
    else:
        n_tok = jnp.float32(target.size)
    nll_s = jnp.sum(nll)
    smooth_s = jnp.sum(smooth)
    loss = (1.0 - ls) * nll_s + (ls / V) * smooth_s
    return loss / n_tok, nll_s / n_tok


if __name__ == "__main__":
    key = jax.random.PRNGKey(0)
    label_smoothing = 0.1

    # --- Test 1: small shapes (single-tile grid), masked and unmasked. -----
    batch, seq, vocab = 2, 8, 32
    k1, k2, k3 = jax.random.split(key, 3)
    logits = jax.nn.log_softmax(
        jax.random.normal(k1, (batch, seq, vocab), jnp.float32), axis=-1)
    target = jax.random.randint(k2, (batch, seq), 0, vocab, dtype=jnp.int32)
    target_mask = (jax.random.uniform(k3, (batch, seq)) > 0.25).astype(jnp.int32)

    loss_m, nll_m = label_smoothing_loss(logits, target, target_mask,
                                         label_smoothing=label_smoothing)
    loss_u, nll_u = label_smoothing_loss(logits, target, None,
                                         label_smoothing=label_smoothing)
    jax.block_until_ready((loss_m, nll_m, loss_u, nll_u))

    ref_lm, ref_nm = _reference(logits, target, target_mask, label_smoothing)
    ref_lu, ref_nu = _reference(logits, target, None, label_smoothing)
    assert jnp.allclose(loss_m, ref_lm, atol=1e-5, rtol=1e-5)
    assert jnp.allclose(nll_m, ref_nm, atol=1e-5, rtol=1e-5)
    assert jnp.allclose(loss_u, ref_lu, atol=1e-5, rtol=1e-5)
    assert jnp.allclose(nll_u, ref_nu, atol=1e-5, rtol=1e-5)

    # --- Test 2: forced multi-step (row x vocab) grid, exact tiling. -------
    vocab2 = 384
    logits2 = jax.random.normal(k1, (batch, seq, vocab2), jnp.float32)
    target2 = jax.random.randint(k2, (batch, seq), 0, vocab2, dtype=jnp.int32)
    loss2, nll2 = label_smoothing_loss(logits2, target2, target_mask,
                                       label_smoothing=label_smoothing,
                                       tn_max=8, tv_max=128)
    jax.block_until_ready((loss2, nll2))
    ref_l2, ref_n2 = _reference(logits2, target2, target_mask, label_smoothing)
    assert jnp.allclose(loss2, ref_l2, atol=1e-5, rtol=1e-5)
    assert jnp.allclose(nll2, ref_n2, atol=1e-5, rtol=1e-5)

    # --- Test 3: ragged rows (N=15) and ragged vocab (200) -> in-kernel ----
    # row/col masking with no wrapper-side padding.
    b3, s3, v3 = 3, 5, 200
    k4, k5, k6 = jax.random.split(jax.random.PRNGKey(1), 3)
    logits3 = jax.random.normal(k4, (b3, s3, v3), jnp.float32)
    target3 = jax.random.randint(k5, (b3, s3), 0, v3, dtype=jnp.int32)
    mask3 = (jax.random.uniform(k6, (b3, s3)) > 0.3).astype(jnp.int32)
    loss3m, nll3m = label_smoothing_loss(logits3, target3, mask3,
                                         label_smoothing=label_smoothing,
                                         tn_max=8, tv_max=128)
    loss3u, nll3u = label_smoothing_loss(logits3, target3, None,
                                         label_smoothing=label_smoothing,
                                         tn_max=8, tv_max=128)
    jax.block_until_ready((loss3m, nll3m, loss3u, nll3u))
    ref_l3m, ref_n3m = _reference(logits3, target3, mask3, label_smoothing)
    ref_l3u, ref_n3u = _reference(logits3, target3, None, label_smoothing)
    assert jnp.allclose(loss3m, ref_l3m, atol=1e-5, rtol=1e-5)
    assert jnp.allclose(nll3m, ref_n3m, atol=1e-5, rtol=1e-5)
    assert jnp.allclose(loss3u, ref_l3u, atol=1e-5, rtol=1e-5)
    assert jnp.allclose(nll3u, ref_n3u, atol=1e-5, rtol=1e-5)

    print("KERNEL_OK")
</pallas_src>

<mosaic_0001>
module attributes {stable_mosaic.version = 11 : i64} {
  func.func @kernel(%arg0: i32, %arg1: i32, %arg2: memref<16x32xf32, #tpu.memory_space<vmem>>, %arg3: memref<16x1xi32, #tpu.memory_space<vmem>>, %arg4: memref<16x1xf32, #tpu.memory_space<vmem>>, %arg5: memref<1x1x128xf32, #tpu.memory_space<vmem>>, %arg6: memref<1x1x128xf32, #tpu.memory_space<vmem>>, %arg7: memref<1x1x128xf32, #tpu.memory_space<vmem>>) attributes {dimension_semantics = [#tpu.dimension_semantics<parallel>, #tpu.dimension_semantics<arbitrary>], iteration_bounds = array<i64: 1, 1>, scalar_prefetch = 0 : i64, scratch_operands = 0 : i64, tpu.core_type = #tpu.core_type<tc>, window_params = [{transform_indices = @transform_0, window_bounds = array<i64: 16, 32>}, {transform_indices = @transform_1, window_bounds = array<i64: 16, 1>}, {transform_indices = @transform_2, window_bounds = array<i64: 16, 1>}, {transform_indices = @transform_3, window_bounds = array<i64: 1, 1, 128>}, {transform_indices = @transform_4, window_bounds = array<i64: 1, 1, 128>}, {transform_indices = @transform_5, window_bounds = array<i64: 1, 1, 128>}]} {
    %c0_i32 = arith.constant 0 : i32
    %0 = arith.cmpi eq, %arg1, %c0_i32 : i32
    %1 = arith.extui %0 : i1 to i32
    %c0_i32_0 = arith.constant 0 : i32
    %2 = arith.cmpi ne, %1, %c0_i32_0 : i32
    scf.if %2 {
      %cst_26 = arith.constant 0.000000e+00 : f32
      %47 = vector.broadcast %cst_26 : f32 to vector<1x1x128xf32>
      %c0_27 = arith.constant 0 : index
      %c0_28 = arith.constant 0 : index
      %c0_29 = arith.constant 0 : index
      %48 = vector.load %arg5[%c0_27, %c0_28, %c0_29] : memref<1x1x128xf32, #tpu.memory_space<vmem>>, vector<1x1x128xf32>
      tpu.vector_store %arg5[%c0_27, %c0_28, %c0_29], %47 {strides = array<i32>} : memref<1x1x128xf32, #tpu.memory_space<vmem>>, vector<1x1x128xf32>,
      %cst_30 = arith.constant 0.000000e+00 : f32
      %49 = vector.broadcast %cst_30 : f32 to vector<1x1x128xf32>
      %c0_31 = arith.constant 0 : index
      %c0_32 = arith.constant 0 : index
      %c0_33 = arith.constant 0 : index
      %50 = vector.load %arg6[%c0_31, %c0_32, %c0_33] : memref<1x1x128xf32, #tpu.memory_space<vmem>>, vector<1x1x128xf32>
      tpu.vector_store %arg6[%c0_31, %c0_32, %c0_33], %49 {strides = array<i32>} : memref<1x1x128xf32, #tpu.memory_space<vmem>>, vector<1x1x128xf32>,
      %cst_34 = arith.constant 0.000000e+00 : f32
      %51 = vector.broadcast %cst_34 : f32 to vector<1x1x128xf32>
      %c0_35 = arith.constant 0 : index
      %c0_36 = arith.constant 0 : index
      %c0_37 = arith.constant 0 : index
      %52 = vector.load %arg7[%c0_35, %c0_36, %c0_37] : memref<1x1x128xf32, #tpu.memory_space<vmem>>, vector<1x1x128xf32>
      tpu.vector_store %arg7[%c0_35, %c0_36, %c0_37], %51 {strides = array<i32>} : memref<1x1x128xf32, #tpu.memory_space<vmem>>, vector<1x1x128xf32>,
    } else {
    }
    %c0 = arith.constant 0 : index
    %c0_1 = arith.constant 0 : index
    %3 = vector.load %arg2[%c0, %c0_1] : memref<16x32xf32, #tpu.memory_space<vmem>>, vector<16x32xf32>
    %c0_2 = arith.constant 0 : index
    %c0_3 = arith.constant 0 : index
    %4 = vector.load %arg3[%c0_2, %c0_3] : memref<16x1xi32, #tpu.memory_space<vmem>>, vector<16x1xi32>
    %c0_4 = arith.constant 0 : index
    %c0_5 = arith.constant 0 : index
    %5 = vector.load %arg4[%c0_4, %c0_5] : memref<16x1xf32, #tpu.memory_space<vmem>>, vector<16x1xf32>
    %6 = tpu.iota {dimensions = array<i32: 1>} : vector<16x32xi32>
    %c32_i32 = arith.constant 32 : i32
    %7 = arith.muli %arg1, %c32_i32 : i32
    %8 = vector.broadcast %7 : i32 to vector<16x1xi32>
    %9 = arith.subi %4, %8 : vector<16x1xi32>
    %10 = vector.broadcast %9 : vector<16x1xi32> to vector<16x32xi32>
    %11 = arith.cmpi eq, %6, %10 : vector<16x32xi32>
    %cst = arith.constant 0.000000e+00 : f32
    %12 = vector.broadcast %cst : f32 to vector<16x32xf32>
    %13 = arith.select %11, %3, %12 : vector<16x32xi1>, vector<16x32xf32>
    %cst_6 = arith.constant dense<0.000000e+00> : vector<16xf32>
    %14 = vector.multi_reduction <add>, %13, %cst_6 [1] : vector<16x32xf32> to vector<16xf32>
    %15 = vector.shape_cast %14 : vector<16xf32> to vector<16x1xf32>
    %cst_7 = arith.constant dense<0.000000e+00> : vector<16xf32>
    %16 = vector.multi_reduction <add>, %3, %cst_7 [1] : vector<16x32xf32> to vector<16xf32>
    %17 = vector.shape_cast %16 : vector<16xf32> to vector<16x1xf32>
    %c0_8 = arith.constant 0 : index
    %c0_9 = arith.constant 0 : index
    %c0_10 = arith.constant 0 : index
    %18 = vector.load %arg5[%c0_8, %c0_9, %c0_10] : memref<1x1x128xf32, #tpu.memory_space<vmem>>, vector<1x1x128xf32>
    %cst_11 = arith.constant 0.000000e+00 : f32
    %19 = vector.broadcast %cst_11 : f32 to vector<16x1xf32>
    %20 = arith.subf %19, %15 : vector<16x1xf32>
    %21 = arith.mulf %20, %5 : vector<16x1xf32>
    %22 = vector.shape_cast %21 : vector<16x1xf32> to vector<1x16x1xf32>
    %cst_12 = arith.constant dense<0.000000e+00> : vector<1xf32>
    %23 = vector.multi_reduction <add>, %22, %cst_12 [1, 2] : vector<1x16x1xf32> to vector<1xf32>
    %24 = vector.shape_cast %23 : vector<1xf32> to vector<1x1x1xf32>
    %25 = vector.extract %24[0, 0, 0] : f32 from vector<1x1x1xf32>
    %26 = vector.broadcast %25 : f32 to vector<1x1xf32>
    %27 = vector.shape_cast %26 : vector<1x1xf32> to vector<1x1x1xf32>
    %28 = vector.broadcast %27 : vector<1x1x1xf32> to vector<1x1x128xf32>
    %29 = arith.addf %18, %28 : vector<1x1x128xf32>
    %c0_13 = arith.constant 0 : index
    %c0_14 = arith.constant 0 : index
    %c0_15 = arith.constant 0 : index
    %30 = vector.load %arg5[%c0_13, %c0_14, %c0_15] : memref<1x1x128xf32, #tpu.memory_space<vmem>>, vector<1x1x128xf32>
    tpu.vector_store %arg5[%c0_13, %c0_14, %c0_15], %29 {strides = array<i32>} : memref<1x1x128xf32, #tpu.memory_space<vmem>>, vector<1x1x128xf32>,
    %c0_16 = arith.constant 0 : index
    %c0_17 = arith.constant 0 : index
    %c0_18 = arith.constant 0 : index
    %31 = vector.load %arg6[%c0_16, %c0_17, %c0_18] : memref<1x1x128xf32, #tpu.memory_space<vmem>>, vector<1x1x128xf32>
    %cst_19 = arith.constant 0.000000e+00 : f32
    %32 = vector.broadcast %cst_19 : f32 to vector<16x1xf32>
    %33 = arith.subf %32, %17 : vector<16x1xf32>
    %34 = arith.mulf %33, %5 : vector<16x1xf32>
    %35 = vector.shape_cast %34 : vector<16x1xf32> to vector<1x16x1xf32>
    %cst_20 = arith.constant dense<0.000000e+00> : vector<1xf32>
    %36 = vector.multi_reduction <add>, %35, %cst_20 [1, 2] : vector<1x16x1xf32> to vector<1xf32>
    %37 = vector.shape_cast %36 : vector<1xf32> to vector<1x1x1xf32>
    %38 = vector.extract %37[0, 0, 0] : f32 from vector<1x1x1xf32>
    %39 = vector.broadcast %38 : f32 to vector<1x1xf32>
    %40 = vector.shape_cast %39 : vector<1x1xf32> to vector<1x1x1xf32>
    %41 = vector.broadcast %40 : vector<1x1x1xf32> to vector<1x1x128xf32>
    %42 = arith.addf %31, %41 : vector<1x1x128xf32>
    %c0_21 = arith.constant 0 : index
    %c0_22 = arith.constant 0 : index
    %c0_23 = arith.constant 0 : index
    %43 = vector.load %arg6[%c0_21, %c0_22, %c0_23] : memref<1x1x128xf32, #tpu.memory_space<vmem>>, vector<1x1x128xf32>
    tpu.vector_store %arg6[%c0_21, %c0_22, %c0_23], %42 {strides = array<i32>} : memref<1x1x128xf32, #tpu.memory_space<vmem>>, vector<1x1x128xf32>,
    %c0_i32_24 = arith.constant 0 : i32
    %44 = arith.cmpi eq, %arg1, %c0_i32_24 : i32
    %45 = arith.extui %44 : i1 to i32
    %c0_i32_25 = arith.constant 0 : i32
    %46 = arith.cmpi ne, %45, %c0_i32_25 : i32
    scf.if %46 {
      %c0_26 = arith.constant 0 : index
      %c0_27 = arith.constant 0 : index
      %c0_28 = arith.constant 0 : index
      %47 = vector.load %arg7[%c0_26, %c0_27, %c0_28] : memref<1x1x128xf32, #tpu.memory_space<vmem>>, vector<1x1x128xf32>
      %48 = vector.shape_cast %5 : vector<16x1xf32> to vector<1x16x1xf32>
      %cst_29 = arith.constant dense<0.000000e+00> : vector<1xf32>
      %49 = vector.multi_reduction <add>, %48, %cst_29 [1, 2] : vector<1x16x1xf32> to vector<1xf32>
      %50 = vector.shape_cast %49 : vector<1xf32> to vector<1x1x1xf32>
      %51 = vector.extract %50[0, 0, 0] : f32 from vector<1x1x1xf32>
      %52 = vector.broadcast %51 : f32 to vector<1x1xf32>
      %53 = vector.shape_cast %52 : vector<1x1xf32> to vector<1x1x1xf32>
      %54 = vector.broadcast %53 : vector<1x1x1xf32> to vector<1x1x128xf32>
      %55 = arith.addf %47, %54 : vector<1x1x128xf32>
      %c0_30 = arith.constant 0 : index
      %c0_31 = arith.constant 0 : index
      %c0_32 = arith.constant 0 : index
      %56 = vector.load %arg7[%c0_30, %c0_31, %c0_32] : memref<1x1x128xf32, #tpu.memory_space<vmem>>, vector<1x1x128xf32>
      tpu.vector_store %arg7[%c0_30, %c0_31, %c0_32], %55 {strides = array<i32>} : memref<1x1x128xf32, #tpu.memory_space<vmem>>, vector<1x1x128xf32>,
    } else {
    }
    return
  }
  func.func @transform_0(%arg0: i32, %arg1: i32) -> (i32, i32) {
    %c0_i32 = arith.constant 0 : i32
    return %arg0, %arg1 : i32, i32
  }
  func.func @transform_1(%arg0: i32, %arg1: i32) -> (i32, i32) {
    %c0_i32 = arith.constant 0 : i32
    %c0_i32_0 = arith.constant 0 : i32
    return %arg0, %c0_i32 : i32, i32
  }
  func.func @transform_2(%arg0: i32, %arg1: i32) -> (i32, i32) {
    %c0_i32 = arith.constant 0 : i32
    %c0_i32_0 = arith.constant 0 : i32
    return %arg0, %c0_i32 : i32, i32
  }
  func.func @transform_3(%arg0: i32, %arg1: i32) -> (i32, i32, i32) {
    %c0_i32 = arith.constant 0 : i32
    %c0_i32_0 = arith.constant 0 : i32
    %c0_i32_1 = arith.constant 0 : i32
    return %arg0, %c0_i32, %c0_i32_0 : i32, i32, i32
  }
  func.func @transform_4(%arg0: i32, %arg1: i32) -> (i32, i32, i32) {
    %c0_i32 = arith.constant 0 : i32
    %c0_i32_0 = arith.constant 0 : i32
    %c0_i32_1 = arith.constant 0 : i32
    return %arg0, %c0_i32, %c0_i32_0 : i32, i32, i32
  }
  func.func @transform_5(%arg0: i32, %arg1: i32) -> (i32, i32, i32) {
    %c0_i32 = arith.constant 0 : i32
    %c0_i32_0 = arith.constant 0 : i32
    %c0_i32_1 = arith.constant 0 : i32
    return %arg0, %c0_i32, %c0_i32_0 : i32, i32, i32
  }
}

</mosaic_0001>

<llo_original>
// kernel: tpu_custom_call.1
$region0: #{tpu_custom_call.1}
  #allocation0 [shape = 'u32[]', space=smem, size = 0x4, offset = 0x4, fixed_abs, tag = 'smem constant byte address 0x4 - core index']
  #allocation1 [shape = 'u32[144,128]{1,0:T(1,128)}', space=vmem, size = 0x12000, scoped, tag = 'internal scratch']
  %s0 = inlined_call_operand.vmem [shape: f32[16,32], index: 0, kind: input, shape index: {}]
  %s1 = inlined_call_operand.vmem [shape: s32[16,1], index: 1, kind: input, shape index: {}]
  %s2 = inlined_call_operand.vmem [shape: f32[16,1], index: 2, kind: input, shape index: {}]
  %s3 = inlined_call_operand.hbm [shape: f32[1,1,128], index: 3, kind: output, shape index: {0}]
  %s4 = inlined_call_operand.hbm [shape: f32[1,1,128], index: 4, kind: output, shape index: {1}]
  %s5 = inlined_call_operand.hbm [shape: f32[1,1,128], index: 5, kind: output, shape index: {2}]
  %6 = xla_tuple %s3, %s4, %s5
  %s7 = sld [smem:[#allocation0]]
  $region46: #{tpu_custom_call.1} parent=0
    _
  %s9 = ssub.s32 1, %s7
  %s10 = scalar_select 0, %s9, %s7
  $region1: #{tpu_custom_call.1} parent=0
    #allocation2 [shape = 'u8[512]{0}', space=vmem, size = 0x400, scoped, tag = 'output window, operand 0, single buffered']
    #allocation3 [shape = 's32[1]{0}', space=sflag, size = 0x4, scoped, tag = 'scoped memory for tpu_custom_call.1']
    #allocation4 [shape = 'u8[512]{0}', space=vmem, size = 0x400, scoped, tag = 'output window, operand 1, single buffered']
    #allocation5 [shape = 's32[1]{0}', space=sflag, size = 0x4, scoped, tag = 'scoped memory for tpu_custom_call.1']
    #allocation6 [shape = 'u8[512]{0}', space=vmem, size = 0x400, scoped, tag = 'output window, operand 2, single buffered']
    %11 = vsyncpa [#allocation3], 0
    %12 = vsyncpa [#allocation5], 0
    // Predicated region
    $region2: #{tpu_custom_call.1} parent=1 // pred_check
      _
    $region3: #{tpu_custom_call.1} parent=1 // pred_check_branch
      %14 = sbr.rel (0) target = $region5
    $region4: #{tpu_custom_call.1} parent=1 // pred_region
      _
    $region5: #{tpu_custom_call.1} parent=1 // pred_fallthru
      _
    // Predicated region
    $region6: #{tpu_custom_call.1} parent=1 // pred_check
      _
    $region7: #{tpu_custom_call.1} parent=1 // pred_check_branch
      %16 = sbr.rel (0) target = $region9
    $region8: #{tpu_custom_call.1} parent=1 // pred_region
      _
    $region9: #{tpu_custom_call.1} parent=1 // pred_fallthru
      _
    // Predicated region
    $region10: #{tpu_custom_call.1} parent=1 // pred_check
      _
    $region11: #{tpu_custom_call.1} parent=1 // pred_check_branch
      %18 = sbr.rel (0) target = $region13
    $region12: #{tpu_custom_call.1} parent=1 // pred_region
      _
    $region13: #{tpu_custom_call.1} parent=1 // pred_fallthru
      _
    %p19 = scmp.eq.s32.totalorder 0, 0
    // Predicated region
    $region14: #{tpu_custom_call.1} parent=1 // pred_check
      %p20 = pneg %p19
    $region15: #{tpu_custom_call.1} parent=1 // pred_check_branch
      %22 = sbr.rel (%p20) target = $region17
    $region16: #{tpu_custom_call.1} parent=1 // pred_region
      %23 = vst [vmem:[#allocation2] sm:$0x1] 0.0
      %24 = vst [vmem:[#allocation4] sm:$0x1] 0.0
      %25 = vst [vmem:[#allocation6] sm:$0x1] 0.0
    $region17: #{tpu_custom_call.1} parent=1 // pred_fallthru
      _
    %v26 = vld [vmem:[%s0] sm:$0xff]
    %v27 = vld [vmem:[%s0 + $0x8] sm:$0xff]
    %v28 = vld [vmem:[%s1] sm:$0xff]
    %v29 = vld [vmem:[%s1 + $0x8] sm:$0xff]
    %v30 = vld [vmem:[%s2] sm:$0xff]
    %v31 = vld [vmem:[%s2 + $0x8] sm:$0xff]
    %v32 = vlaneseq
    %v33 = vand.u32 %v32, 127
    %s34 = smul.u32 0, 32
    %v35 = vstv %s34
    %v36 = vsub.s32 %v28, %v35
    %v37 = vsub.s32 %v29, %v35
    %38 = vset.pattern.permute.xlu0 0
    %39 = vperm.xlu0 %38, %v36
    %v40 = vpop.permute.xlu0 %39
    %41 = vset.pattern.permute.xlu0 0
    %42 = vperm.xlu0 %41, %v37
    %v43 = vpop.permute.xlu0 %42
    %vm44 = vcmp.eq.s32.totalorder %v33, %v40
    %vm45 = vcmp.eq.s32.totalorder %v33, %v43
    %v46 = vsel %vm44, %v26, 0.0
    %v47 = vsel %vm45, %v27, 0.0
    %vm48 = vcmask 261120
    %v49 = vsel %vm48, %v46, 0.0
    %50 = vadd.xlane.f32.xlu0 %v49
    %v51 = vpop.xlane.xlu0 %50
    %v52 = vsel %vm48, %v47, 0.0
    %53 = vadd.xlane.f32.xlu0 %v52
    %v54 = vpop.xlane.xlu0 %53
    %v55 = vsel %vm48, %v26, 0.0
    %56 = vadd.xlane.f32.xlu0 %v55
    %v57 = vpop.xlane.xlu0 %56
    %v58 = vsel %vm48, %v27, 0.0
    %59 = vadd.xlane.f32.xlu0 %v58
    %v60 = vpop.xlane.xlu0 %59
    %v61 = vld [vmem:[#allocation2] sm:$0x1]
    %v62 = vsub.f32 0.0, %v51
    %v63 = vsub.f32 0.0, %v54
    %v64 = vmul.f32 %v62, %v30
    %v65 = vmul.f32 %v63, %v31
    %vm66 = vcmask 7168
    %v67 = vsel %vm66, %v64, 0.0
    %v68 = vsel %vm66, %v65, 0.0
    %v69 = vadd.f32 %v67, %v68
    %70 = vadd.xlane.f32.xlu0 %v69
    %v71 = vpop.xlane.xlu0 %70
    %v72 = vrot.slane %v71, 4
    %v73 = vadd.f32 %v71, %v72
    %v74 = vrot.slane %v73, 2
    %v75 = vadd.f32 %v73, %v74
    %v76 = vrot.slane %v75, 1
    %v77 = vadd.f32 %v75, %v76
    %s78 = vtos %v77
    %v79 = vstv %s78
    %v80 = vadd.f32 %v61, %v79
    %81 = vst [vmem:[#allocation2] sm:$0x1] %v80
    %v82 = vld [vmem:[#allocation4] sm:$0x1]
    %v83 = vsub.f32 0.0, %v57
    %v84 = vsub.f32 0.0, %v60
    %v85 = vmul.f32 %v83, %v30
    %v86 = vmul.f32 %v84, %v31
    %v87 = vsel %vm66, %v85, 0.0
    %v88 = vsel %vm66, %v86, 0.0
    %v89 = vadd.f32 %v87, %v88
    %90 = vadd.xlane.f32.xlu0 %v89
    %v91 = vpop.xlane.xlu0 %90
    %v92 = vrot.slane %v91, 4
    %v93 = vadd.f32 %v91, %v92
    %v94 = vrot.slane %v93, 2
    %v95 = vadd.f32 %v93, %v94
    %v96 = vrot.slane %v95, 1
    %v97 = vadd.f32 %v95, %v96
    %s98 = vtos %v97
    %v99 = vstv %s98
    %v100 = vadd.f32 %v82, %v99
    %101 = vst [vmem:[#allocation4] sm:$0x1] %v100
    // Predicated region
    $region18: #{tpu_custom_call.1} parent=1 // pred_check
      %p102 = pneg %p19
    $region19: #{tpu_custom_call.1} parent=1 // pred_check_branch
      %104 = sbr.rel (%p102) target = $region21
    $region20: #{tpu_custom_call.1} parent=1 // pred_region
      %v105 = vld [vmem:[#allocation6] sm:$0x1]
      %v106 = vsel %vm66, %v30, 0.0
      %v107 = vsel %vm66, %v31, 0.0
      %v108 = vadd.f32 %v106, %v107
      %109 = vadd.xlane.f32.xlu0 %v108
      %v110 = vpop.xlane.xlu0 %109
      %v111 = vrot.slane %v110, 4
      %v112 = vadd.f32 %v110, %v111
      %v113 = vrot.slane %v112, 2
      %v114 = vadd.f32 %v112, %v113
      %v115 = vrot.slane %v114, 1
      %v116 = vadd.f32 %v114, %v115
      %s117 = vtos %v116
      %v118 = vstv %s117
      %v119 = vadd.f32 %v105, %v118
      %120 = vst [vmem:[#allocation6] sm:$0x1] %v119
    $region21: #{tpu_custom_call.1} parent=1 // pred_fallthru
      _
    // Predicated region
    $region22: #{tpu_custom_call.1} parent=1 // pred_check
      _
    $region23: #{tpu_custom_call.1} parent=1 // pred_check_branch
      %122 = sbr.rel (0) target = $region25
    $region24: #{tpu_custom_call.1} parent=1 // pred_region
      %s124 = ssub.s32 16, 16
      %125 = vsyncadd [#allocation3], %s124
      %s127 = sshll.u32 [#allocation2], 4
      %s128 = int_to_ptr.vmem [resolvable:$true] %s127
      %130 = dma.vmem_to_hbm [thread:$0]  %s128, 16, %s3, [#allocation3]
    $region25: #{tpu_custom_call.1} parent=1 // pred_fallthru
      _
    // Predicated region
    $region26: #{tpu_custom_call.1} parent=1 // pred_check
      _
    $region27: #{tpu_custom_call.1} parent=1 // pred_check_branch
      %132 = sbr.rel (0) target = $region29
    $region28: #{tpu_custom_call.1} parent=1 // pred_region
      %s134 = ssub.s32 16, 16
      %135 = vsyncadd [#allocation5], %s134
      %s137 = sshll.u32 [#allocation4], 4
      %s138 = int_to_ptr.vmem [resolvable:$true] %s137
      %140 = dma.vmem_to_hbm [thread:$0]  %s138, 16, %s4, [#allocation5]
    $region29: #{tpu_custom_call.1} parent=1 // pred_fallthru
      _
    // Predicated region
    $region30: #{tpu_custom_call.1} parent=1 // pred_check
      _
    $region31: #{tpu_custom_call.1} parent=1 // pred_check_branch
      %142 = sbr.rel (0) target = $region33
    $region32: #{tpu_custom_call.1} parent=1 // pred_region
      %s144 = ssub.s32 16, 16
      %145 = vsyncadd [#allocation5], %s144
      %s147 = sshll.u32 [#allocation6], 4
      %s148 = int_to_ptr.vmem [resolvable:$true] %s147
      %150 = dma.vmem_to_hbm [thread:$0]  %s148, 16, %s5, [#allocation5]
    $region33: #{tpu_custom_call.1} parent=1 // pred_fallthru
      _
    // Predicated region
    $region34: #{tpu_custom_call.1} parent=1 // pred_check
      _
    $region35: #{tpu_custom_call.1} parent=1 // pred_check_branch
      %152 = sbr.rel (0) target = $region37
    $region36: #{tpu_custom_call.1} parent=1 // pred_region
      %153 = dma.done [#allocation3], 16
    $region37: #{tpu_custom_call.1} parent=1 // pred_fallthru
      _
    // Predicated region
    $region38: #{tpu_custom_call.1} parent=1 // pred_check
      _
    $region39: #{tpu_custom_call.1} parent=1 // pred_check_branch
      %155 = sbr.rel (0) target = $region41
    $region40: #{tpu_custom_call.1} parent=1 // pred_region
      %156 = dma.done [#allocation5], 16
    $region41: #{tpu_custom_call.1} parent=1 // pred_fallthru
      _
    // Predicated region
    $region42: #{tpu_custom_call.1} parent=1 // pred_check
      _
    $region43: #{tpu_custom_call.1} parent=1 // pred_check_branch
      %158 = sbr.rel (0) target = $region45
    $region44: #{tpu_custom_call.1} parent=1 // pred_region
      %159 = dma.done [#allocation5], 16
    $region45: #{tpu_custom_call.1} parent=1 // pred_fallthru
      _
    %160 = vsyncpa [#allocation3], 1
    %161 = vsyncpa [#allocation5], 1

</llo_original>
